<compile_context>
chip_gen: v5e
topology: v5e:2x2
jax: 0.10.0
libtpu: 0.0.40
codegen_flags: <defaults>
</compile_context>

<pallas_src>
import functools

import jax
import jax.numpy as jnp
from jax.experimental import pallas as pl
from jax.experimental.pallas import tpu as pltpu


def a3tgcn_kernel(x_ref, a_ref, w_ref, b_ref, s_ref, out_ref, *, gate_width):
    """One-shot A3TGCN forward.

    x_ref : (N, P*Fin)      node rows, period-major / feature-minor lanes
    a_ref : (N, N)          dense symmetric-normalized adjacency
    w_ref : (P*Fin, 2*P*C)  block-diag [Wz_eff | Wh_eff] replicated per period
    b_ref : (1, 2*P*C)      folded biases, tiled per period
    s_ref : (P*C, C)        attention selector: S[p*C+c, c] = softmax(attention)[p]
    out_ref: (N, C)
    """
    # Stage 1: per-period feature transform for both gates, all periods fused into lanes.
    xw = jnp.dot(x_ref[...], w_ref[...], preferred_element_type=jnp.float32)         # (N, 2*P*C)
    # Stage 2: graph propagation for all periods / both gates in a single matmul.
    conv = jnp.dot(a_ref[...], xw, preferred_element_type=jnp.float32) + b_ref[...]  # (N, 2*P*C)
    # Stage 3: gate nonlinearities. gate_width = P*C is a multiple of 128 -> clean lane slices.
    z = jax.nn.sigmoid(conv[:, :gate_width])
    h_tilde = jnp.tanh(conv[:, gate_width:])
    h_new = (1.0 - z) * h_tilde            # H0 == 0  =>  H_new = Z*H + (1-Z)*Ht = (1-Z)*Ht
    # Stage 4: attention-weighted sum over periods as one matmul (probs folded into S).
    out_ref[...] = jnp.dot(
        h_new, s_ref[...], preferred_element_type=jnp.float32
    ).astype(out_ref.dtype)


def _dense_gcn_norm_adj(edge_index, num_nodes):
    """GCN symmetric normalization, add_self_loops=False, edge_weight=None."""
    row, col = edge_index[0], edge_index[1]
    ones = jnp.ones(row.shape[0], jnp.float32)
    deg = jnp.zeros((num_nodes,), jnp.float32).at[col].add(ones)
    dinv = jnp.where(deg > 0, 1.0 / jnp.sqrt(deg), 0.0)
    norm = dinv[row] * ones * dinv[col]
    # message passing: out[col] += norm * x[row]  =>  A_hat[col, row] = norm
    return jnp.zeros((num_nodes, num_nodes), jnp.float32).at[col, row].add(norm)


@functools.partial(jax.jit, static_argnames=())
def encoder_a3tgcn_forward(x, edge_index, params):
    """x: (N, F_in, periods) float32; edge_index: (2, E) int32."""
    N, Fin, periods = x.shape
    C = params["w_z"].shape[1]

    # Dropout(p) in eval mode == identity.
    # TODO(synk): training-mode dropout RNG not reproduced (would use pltpu.prng_random_bits).

    a_hat = _dense_gcn_norm_adj(edge_index, N)            # dense normalized adjacency (glue)
    probs = jax.nn.softmax(params["attention"])           # (periods,) attention weights

    # --- parameter-only preprocessing (would be cached in a real deployment) ---
    # Fold GCN weight + gate linear:  (A@(X@Wg)+bg)@Lg + lbg == A@(X@(Wg@Lg)) + (bg@Lg + lbg)
    wz_eff = params["w_z"] @ params["lw_z1"]                              # (Fin, C)
    wh_eff = params["w_h"] @ params["lw_h1"]                              # (Fin, C)
    bz_eff = params["b_z"] @ params["lw_z1"] + params["lb_z"]             # (1, C)
    bh_eff = params["b_h"] @ params["lw_h1"] + params["lb_h"]             # (1, C)

    eye_p = jnp.eye(periods, dtype=jnp.float32)
    w_big = jnp.concatenate(
        [jnp.kron(eye_p, wz_eff), jnp.kron(eye_p, wh_eff)], axis=1
    )                                                                      # (P*Fin, 2*P*C)
    b_wide = jnp.concatenate(
        [jnp.tile(bz_eff, (1, periods)), jnp.tile(bh_eff, (1, periods))], axis=1
    )                                                                      # (1, 2*P*C)
    s_mat = jnp.kron(probs[:, None], jnp.eye(C, dtype=jnp.float32))        # (P*C, C)

    # layout plumbing: (N, Fin, periods) -> (N, periods*Fin), period-major / feature-minor lanes
    x_wide = jnp.transpose(x, (0, 2, 1)).reshape(N, periods * Fin).astype(jnp.float32)

    kernel = functools.partial(a3tgcn_kernel, gate_width=periods * C)
    vmem = pltpu.MemorySpace.VMEM

    return pl.pallas_call(
        kernel,
        out_shape=jax.ShapeDtypeStruct((N, C), jnp.float32),
        in_specs=[
            pl.BlockSpec(memory_space=vmem),   # x_wide  (N, P*Fin)
            pl.BlockSpec(memory_space=vmem),   # a_hat   (N, N)
            pl.BlockSpec(memory_space=vmem),   # w_big   (P*Fin, 2*P*C)
            pl.BlockSpec(memory_space=vmem),   # b_wide  (1, 2*P*C)
            pl.BlockSpec(memory_space=vmem),   # s_mat   (P*C, C)
        ],
        out_specs=pl.BlockSpec(memory_space=vmem),
    )(x_wide, a_hat, w_big, b_wide, s_mat)


def reference_forward(x, edge_index, params):
    """Pure-JAX reference mirroring the original A3TGCN/TGCN math (for validation)."""
    N, Fin, periods = x.shape
    C = params["w_z"].shape[1]
    a_hat = _dense_gcn_norm_adj(edge_index, N)
    probs = jax.nn.softmax(params["attention"])
    H = jnp.zeros((N, C), jnp.float32)
    acc = jnp.zeros((N, C), jnp.float32)
    for p in range(periods):
        Xp = x[:, :, p]
        cz = a_hat @ (Xp @ params["w_z"]) + params["b_z"]
        cr = a_hat @ (Xp @ params["w_r"]) + params["b_r"]
        ch = a_hat @ (Xp @ params["w_h"]) + params["b_h"]
        Z = jax.nn.sigmoid(cz @ params["lw_z1"] + H @ params["lw_z2"] + params["lb_z"])
        R = jax.nn.sigmoid(cr @ params["lw_r1"] + H @ params["lw_r2"] + params["lb_r"])
        Ht = jnp.tanh(ch @ params["lw_h1"] + (H * R) @ params["lw_h2"] + params["lb_h"])
        Hn = Z * H + (1.0 - Z) * Ht
        acc = acc + probs[p] * Hn
    return acc


def init_params(key, in_channels, out_channels, periods):
    """Deterministic synthetic init with the same parameter shapes as the PyTorch module."""
    C, Fin = out_channels, in_channels
    ks = jax.random.split(key, 16)

    def glorot(k, shape):
        lim = jnp.sqrt(6.0 / (shape[0] + shape[1]))
        return jax.random.uniform(k, shape, jnp.float32, -lim, lim)

    return {
        # GCNConv weight (C, Fin) passed pre-transposed as (Fin, C); bias (C,) as (1, C).
        "w_z": glorot(ks[0], (Fin, C)),
        "w_r": glorot(ks[1], (Fin, C)),
        "w_h": glorot(ks[2], (Fin, C)),
        "b_z": 0.01 * jax.random.normal(ks[3], (1, C), jnp.float32),
        "b_r": 0.01 * jax.random.normal(ks[4], (1, C), jnp.float32),
        "b_h": 0.01 * jax.random.normal(ks[5], (1, C), jnp.float32),
        # torch.nn.Linear(2C, C) weight (C, 2C): split into conv-part / H-part, transposed.
        "lw_z1": glorot(ks[6], (C, C)), "lw_z2": glorot(ks[7], (C, C)),
        "lw_r1": glorot(ks[8], (C, C)), "lw_r2": glorot(ks[9], (C, C)),
        "lw_h1": glorot(ks[10], (C, C)), "lw_h2": glorot(ks[11], (C, C)),
        "lb_z": 0.01 * jax.random.normal(ks[12], (1, C), jnp.float32),
        "lb_r": 0.01 * jax.random.normal(ks[13], (1, C), jnp.float32),
        "lb_h": 0.01 * jax.random.normal(ks[14], (1, C), jnp.float32),
        # A3TGCN attention parameter, uniform init, periods entries.
        "attention": jax.random.uniform(ks[15], (periods,), jnp.float32),
    }


if __name__ == "__main__":
    N, F_IN, C_OUT, PERIODS = 16, 4, 32, 8

    key = jax.random.PRNGKey(0)
    k_x, k_p = jax.random.split(key)

    # X: (num_nodes, in_channels, periods) — the layout A3TGCN's forward expects.
    x = jax.random.normal(k_x, (N, F_IN, PERIODS), jnp.float32)

    # Deterministic bidirectional ring graph: edge_index (2, 2N).
    src = jnp.concatenate([jnp.arange(N), (jnp.arange(N) + 1) % N]).astype(jnp.int32)
    dst = jnp.concatenate([(jnp.arange(N) + 1) % N, jnp.arange(N)]).astype(jnp.int32)
    edge_index = jnp.stack([src, dst], axis=0)

    params = init_params(k_p, F_IN, C_OUT, PERIODS)

    out = encoder_a3tgcn_forward(x, edge_index, params)
    out = jax.block_until_ready(out)

    ref = reference_forward(x, edge_index, params)
    max_err = float(jnp.max(jnp.abs(out - ref)))
    assert out.shape == (N, C_OUT)
    assert max_err < 1e-3, f"mismatch vs reference: {max_err}"

    print("KERNEL_OK")
</pallas_src>

<mosaic_0001>
module attributes {stable_mosaic.version = 11 : i64} {
  func.func @a3tgcn_kernel(%arg0: memref<16x32xf32, #tpu.memory_space<vmem>>, %arg1: memref<16x16xf32, #tpu.memory_space<vmem>>, %arg2: memref<32x512xf32, #tpu.memory_space<vmem>>, %arg3: memref<1x512xf32, #tpu.memory_space<vmem>>, %arg4: memref<256x32xf32, #tpu.memory_space<vmem>>, %arg5: memref<16x32xf32, #tpu.memory_space<vmem>>) attributes {dimension_semantics = [], scalar_prefetch = 0 : i64, scratch_operands = 0 : i64, tpu.core_type = #tpu.core_type<tc>} {
    %c0 = arith.constant 0 : index
    %c0_0 = arith.constant 0 : index
    %0 = vector.load %arg0[%c0, %c0_0] : memref<16x32xf32, #tpu.memory_space<vmem>>, vector<16x32xf32>
    %c0_1 = arith.constant 0 : index
    %c0_2 = arith.constant 0 : index
    %1 = vector.load %arg2[%c0_1, %c0_2] : memref<32x512xf32, #tpu.memory_space<vmem>>, vector<32x512xf32>
    %cst = arith.constant dense<0.000000e+00> : vector<16x512xf32>
    %2 = tpu.matmul %0, %1, %cst {dimension_numbers = #tpu.dot_dimension_numbers<[1], [0], [0], [1], [0, 0, 1, 1], [], []>} : vector<16x32xf32>, vector<32x512xf32>, vector<16x512xf32> -> vector<16x512xf32>
    %c0_3 = arith.constant 0 : index
    %c0_4 = arith.constant 0 : index
    %3 = vector.load %arg1[%c0_3, %c0_4] : memref<16x16xf32, #tpu.memory_space<vmem>>, vector<16x16xf32>
    %cst_5 = arith.constant dense<0.000000e+00> : vector<16x512xf32>
    %4 = tpu.matmul %3, %2, %cst_5 {dimension_numbers = #tpu.dot_dimension_numbers<[1], [0], [0], [1], [0, 0, 1, 1], [], []>} : vector<16x16xf32>, vector<16x512xf32>, vector<16x512xf32> -> vector<16x512xf32>
    %c0_6 = arith.constant 0 : index
    %c0_7 = arith.constant 0 : index
    %5 = vector.load %arg3[%c0_6, %c0_7] : memref<1x512xf32, #tpu.memory_space<vmem>>, vector<1x512xf32>
    %6 = vector.broadcast %5 : vector<1x512xf32> to vector<16x512xf32>
    %7 = arith.addf %4, %6 : vector<16x512xf32>
    %8 = vector.extract_strided_slice %7 {offsets = [0, 0], sizes = [16, 256], strides = [1, 1]} : vector<16x512xf32> to vector<16x256xf32>
    %9 = arith.negf %8 : vector<16x256xf32>
    %10 = math.exp %9 : vector<16x256xf32>
    %cst_8 = arith.constant 1.000000e+00 : f32
    %11 = vector.broadcast %cst_8 : f32 to vector<16x256xf32>
    %12 = arith.addf %11, %10 : vector<16x256xf32>
    %13 = arith.divf %11, %12 : vector<16x256xf32>
    %14 = vector.extract_strided_slice %7 {offsets = [0, 256], sizes = [16, 256], strides = [1, 1]} : vector<16x512xf32> to vector<16x256xf32>
    %15 = math.tanh %14 : vector<16x256xf32>
    %cst_9 = arith.constant 1.000000e+00 : f32
    %16 = vector.broadcast %cst_9 : f32 to vector<16x256xf32>
    %17 = arith.subf %16, %13 : vector<16x256xf32>
    %18 = arith.mulf %17, %15 : vector<16x256xf32>
    %c0_10 = arith.constant 0 : index
    %c0_11 = arith.constant 0 : index
    %19 = vector.load %arg4[%c0_10, %c0_11] : memref<256x32xf32, #tpu.memory_space<vmem>>, vector<256x32xf32>
    %cst_12 = arith.constant dense<0.000000e+00> : vector<16x32xf32>
    %20 = tpu.matmul %18, %19, %cst_12 {dimension_numbers = #tpu.dot_dimension_numbers<[1], [0], [0], [1], [0, 0, 1, 1], [], []>} : vector<16x256xf32>, vector<256x32xf32>, vector<16x32xf32> -> vector<16x32xf32>
    %c0_13 = arith.constant 0 : index
    %c0_14 = arith.constant 0 : index
    %21 = vector.load %arg5[%c0_13, %c0_14] : memref<16x32xf32, #tpu.memory_space<vmem>>, vector<16x32xf32>
    tpu.vector_store %arg5[%c0_13, %c0_14], %20 {strides = array<i32>} : memref<16x32xf32, #tpu.memory_space<vmem>>, vector<16x32xf32>,
    return
  }
}

</mosaic_0001>

<llo_original>
// kernel: mul.29
$region0: #{mul.29}
  #allocation0 [shape = 's32[1]{0}', space=sflag, size = 0x4, scoped, tag = 'scoped memory for mul.29']
  %s0 = inlined_call_operand.vmem [shape: f32[32], index: 0, kind: input, shape index: {}]
  %s1 = inlined_call_operand.vmem [shape: f32[32], index: 1, kind: input, shape index: {}]
  %s2 = inlined_call_operand.vmem [shape: f32[32], index: 2, kind: output, shape index: {}]
  %v3 = vld [vmem:[%s0] sm:$0x1]
  %v4 = vld [vmem:[%s1] sm:$0x1]
  %5 = xla_tuple %v3, %v4
  %6 = xla_tuple %5
  %v7 = vmul.f32 %v3, %v4
  %8 = xla_tuple %v7
  %9 = vst [vmem:[%s2] sm:$0x1] %v7

// kernel: encoder_a3tgcn_forward.1
$region0: #{encoder_a3tgcn_forward.1}
  #allocation0 [shape = 'u32[]', space=smem, size = 0x4, offset = 0x4, fixed_abs, tag = 'smem constant byte address 0x4 - core index']
  #allocation1 [shape = 'u32[72,128]{1,0:T(1,128)}', space=vmem, size = 0x9000, scoped, tag = 'internal scratch']
  %s0 = inlined_call_operand.vmem [shape: f32[16,32], index: 0, kind: input, shape index: {}]
  %s1 = inlined_call_operand.vmem [shape: f32[16,16], index: 1, kind: input, shape index: {}]
  %s2 = inlined_call_operand.vmem [shape: f32[32,512], index: 2, kind: input, shape index: {}]
  %s3 = inlined_call_operand.vmem [shape: f32[1,512], index: 3, kind: input, shape index: {}]
  %s4 = inlined_call_operand.vmem [shape: f32[256,32], index: 4, kind: input, shape index: {}]
  %s5 = inlined_call_operand.hbm [shape: f32[16,32], index: 5, kind: output, shape index: {}]
  %s6 = sld [smem:[#allocation0]]
  $region30: #{encoder_a3tgcn_forward.1} parent=0
    _
  %s8 = ssub.s32 1, %s6
  %s9 = scalar_select 0, %s8, %s6
  $region1: #{encoder_a3tgcn_forward.1} parent=0
    #allocation2 [shape = 'u8[8192]{0}', space=vmem, size = 0x2000, scoped, tag = 'output window, operand 0, single buffered']
    #allocation3 [shape = 's32[1]{0}', space=sflag, size = 0x4, scoped, tag = 'scoped memory for encoder_a3tgcn_forward.1']
    %10 = vsyncpa [#allocation3], 0
    // Predicated region
    $region2: #{encoder_a3tgcn_forward.1} parent=1 // pred_check
      _
    $region3: #{encoder_a3tgcn_forward.1} parent=1 // pred_check_branch
      %12 = sbr.rel (0) target = $region5
    $region4: #{encoder_a3tgcn_forward.1} parent=1 // pred_region
      _
    $region5: #{encoder_a3tgcn_forward.1} parent=1 // pred_fallthru
      _
    // Predicated region
    $region6: #{encoder_a3tgcn_forward.1} parent=1 // pred_check
      _
    $region7: #{encoder_a3tgcn_forward.1} parent=1 // pred_check_branch
      %14 = sbr.rel (0) target = $region9
    $region8: #{encoder_a3tgcn_forward.1} parent=1 // pred_region
      _
    $region9: #{encoder_a3tgcn_forward.1} parent=1 // pred_fallthru
      _
    // Predicated region
    $region10: #{encoder_a3tgcn_forward.1} parent=1 // pred_check
      _
    $region11: #{encoder_a3tgcn_forward.1} parent=1 // pred_check_branch
      %16 = sbr.rel (0) target = $region13
    $region12: #{encoder_a3tgcn_forward.1} parent=1 // pred_region
      _
    $region13: #{encoder_a3tgcn_forward.1} parent=1 // pred_fallthru
      _
    // Predicated region
    $region14: #{encoder_a3tgcn_forward.1} parent=1 // pred_check
      _
    $region15: #{encoder_a3tgcn_forward.1} parent=1 // pred_check_branch
      %18 = sbr.rel (0) target = $region17
    $region16: #{encoder_a3tgcn_forward.1} parent=1 // pred_region
      _
    $region17: #{encoder_a3tgcn_forward.1} parent=1 // pred_fallthru
      _
    // Predicated region
    $region18: #{encoder_a3tgcn_forward.1} parent=1 // pred_check
      _
    $region19: #{encoder_a3tgcn_forward.1} parent=1 // pred_check_branch
      %20 = sbr.rel (0) target = $region21
    $region20: #{encoder_a3tgcn_forward.1} parent=1 // pred_region
      _
    $region21: #{encoder_a3tgcn_forward.1} parent=1 // pred_fallthru
      _
    %v21 = vld [vmem:[%s0] sm:$0xff]
    %v22 = vld [vmem:[%s0 + $0x8] sm:$0xff]
    %v23 = vld [vmem:[%s2] sm:$0xff]
    %v24 = vld [vmem:[%s2 + $0x8] sm:$0xff]
    %v25 = vld [vmem:[%s2 + $0x10] sm:$0xff]
    %v26 = vld [vmem:[%s2 + $0x18] sm:$0xff]
    %v27 = vld [vmem:[%s2 + $0x20] sm:$0xff]
    %v28 = vld [vmem:[%s2 + $0x28] sm:$0xff]
    %v29 = vld [vmem:[%s2 + $0x30] sm:$0xff]
    %v30 = vld [vmem:[%s2 + $0x38] sm:$0xff]
    %v31 = vld [vmem:[%s2 + $0x40] sm:$0xff]
    %v32 = vld [vmem:[%s2 + $0x48] sm:$0xff]
    %v33 = vld [vmem:[%s2 + $0x50] sm:$0xff]
    %v34 = vld [vmem:[%s2 + $0x58] sm:$0xff]
    %v35 = vld [vmem:[%s2 + $0x60] sm:$0xff]
    %v36 = vld [vmem:[%s2 + $0x68] sm:$0xff]
    %v37 = vld [vmem:[%s2 + $0x70] sm:$0xff]
    %v38 = vld [vmem:[%s2 + $0x78] sm:$0xff]
    %vm39 = vcmask 261120
    %v41 = vsel %vm39, %v21, 0
    %v44 = vsel %vm39, %v22, 0
    %46 = vmatpush.msra.mxu0 0.0
    %47 = vmatpush.msra.mxu0 0.0
    %48 = vmatpush.msra.mxu0 0.0
    %49 = vmatpush.msra.mxu0 0.0
    %50 = vmatpush.msra.mxu0 0.0
    %51 = vmatpush.msra.mxu0 0.0
    %52 = vmatpush.msra.mxu0 0.0
    %53 = vmatpush.msra.mxu0 0.0
    %54 = vmatpush.msra.mxu0 0.0
    %55 = vmatpush.msra.mxu0 0.0
    %56 = vmatpush.msra.mxu0 0.0
    %57 = vmatpush.msra.mxu0 0.0
    %58 = vmatpush.msra.mxu0 %v35
    %59 = vmatpush.msra.mxu0 %v31
    %60 = vmatpush.msra.mxu0 %v27
    %61 = vmatpush.msra.mxu0 %v23
    %62 = vmatmul.f32.gmra.mxu0 %v41
    %v63 = vpop.f32.mrf.mxu0
    %v64 = vadd.f32 0.0, %v63
    %65 = vmatmul.f32.gmra.mxu0 %v44
    %v66 = vpop.f32.mrf.mxu0
    %v67 = vadd.f32 0.0, %v66
    %68 = vdwg.mxu0
    %69 = vmatpush.msra.mxu0 0.0
    %70 = vmatpush.msra.mxu0 0.0
    %71 = vmatpush.msra.mxu0 0.0
    %72 = vmatpush.msra.mxu0 0.0
    %73 = vmatpush.msra.mxu0 0.0
    %74 = vmatpush.msra.mxu0 0.0
    %75 = vmatpush.msra.mxu0 0.0
    %76 = vmatpush.msra.mxu0 0.0
    %77 = vmatpush.msra.mxu0 0.0
    %78 = vmatpush.msra.mxu0 0.0
    %79 = vmatpush.msra.mxu0 0.0
    %80 = vmatpush.msra.mxu0 0.0
    %81 = vmatpush.msra.mxu0 %v36
    %82 = vmatpush.msra.mxu0 %v32
    %83 = vmatpush.msra.mxu0 %v28
    %84 = vmatpush.msra.mxu0 %v24
    %85 = vmatmul.f32.gmra.mxu0 %v41
    %v86 = vpop.f32.mrf.mxu0
    %v87 = vadd.f32 0.0, %v86
    %88 = vmatmul.f32.gmra.mxu0 %v44
    %v89 = vpop.f32.mrf.mxu0
    %v90 = vadd.f32 0.0, %v89
    %91 = vdwg.mxu0
    %92 = vmatpush.msra.mxu0 0.0
    %93 = vmatpush.msra.mxu0 0.0
    %94 = vmatpush.msra.mxu0 0.0
    %95 = vmatpush.msra.mxu0 0.0
    %96 = vmatpush.msra.mxu0 0.0
    %97 = vmatpush.msra.mxu0 0.0
    %98 = vmatpush.msra.mxu0 0.0
    %99 = vmatpush.msra.mxu0 0.0
    %100 = vmatpush.msra.mxu0 0.0
    %101 = vmatpush.msra.mxu0 0.0
    %102 = vmatpush.msra.mxu0 0.0
    %103 = vmatpush.msra.mxu0 0.0
    %104 = vmatpush.msra.mxu0 %v37
    %105 = vmatpush.msra.mxu0 %v33
    %106 = vmatpush.msra.mxu0 %v29
    %107 = vmatpush.msra.mxu0 %v25
    %108 = vmatmul.f32.gmra.mxu0 %v41
    %v109 = vpop.f32.mrf.mxu0
    %v110 = vadd.f32 0.0, %v109
    %111 = vmatmul.f32.gmra.mxu0 %v44
    %v112 = vpop.f32.mrf.mxu0
    %v113 = vadd.f32 0.0, %v112
    %114 = vdwg.mxu0
    %115 = vmatpush.msra.mxu0 0.0
    %116 = vmatpush.msra.mxu0 0.0
    %117 = vmatpush.msra.mxu0 0.0
    %118 = vmatpush.msra.mxu0 0.0
    %119 = vmatpush.msra.mxu0 0.0
    %120 = vmatpush.msra.mxu0 0.0
    %121 = vmatpush.msra.mxu0 0.0
    %122 = vmatpush.msra.mxu0 0.0
    %123 = vmatpush.msra.mxu0 0.0
    %124 = vmatpush.msra.mxu0 0.0
    %125 = vmatpush.msra.mxu0 0.0
    %126 = vmatpush.msra.mxu0 0.0
    %127 = vmatpush.msra.mxu0 %v38
    %128 = vmatpush.msra.mxu0 %v34
    %129 = vmatpush.msra.mxu0 %v30
    %130 = vmatpush.msra.mxu0 %v26
    %131 = vmatmul.f32.gmra.mxu0 %v41
    %v132 = vpop.f32.mrf.mxu0
    %v133 = vadd.f32 0.0, %v132
    %134 = vmatmul.f32.gmra.mxu0 %v44
    %v135 = vpop.f32.mrf.mxu0
    %v136 = vadd.f32 0.0, %v135
    %137 = vdwg.mxu0
    %v138 = vld [vmem:[%s1] sm:$0xff]
    %v139 = vld [vmem:[%s1 + $0x8] sm:$0xff]
    %v140 = vld [vmem:[%s3] sm:$0xf]
    %v142 = vperm.slane %v140, 0
    %v143 = vperm.slane %v140, 1
    %v144 = vperm.slane %v140, 2
    %v145 = vperm.slane %v140, 3
    %vm150 = vcmask 130048
    %v152 = vsel %vm150, %v138, 0
    %v155 = vsel %vm150, %v139, 0
    %157 = vmatpush.msra.mxu0 0.0
    %158 = vmatpush.msra.mxu0 0.0
    %159 = vmatpush.msra.mxu0 0.0
    %160 = vmatpush.msra.mxu0 0.0
    %161 = vmatpush.msra.mxu0 0.0
    %162 = vmatpush.msra.mxu0 0.0
    %163 = vmatpush.msra.mxu0 0.0
    %164 = vmatpush.msra.mxu0 0.0
    %165 = vmatpush.msra.mxu0 0.0
    %166 = vmatpush.msra.mxu0 0.0
    %167 = vmatpush.msra.mxu0 0.0
    %168 = vmatpush.msra.mxu0 0.0
    %169 = vmatpush.msra.mxu0 0.0
    %170 = vmatpush.msra.mxu0 0.0
    %171 = vmatpush.msra.mxu0 %v67
    %172 = vmatpush.msra.mxu0 %v64
    %173 = vmatmul.f32.gmra.mxu0 %v152
    %v174 = vpop.f32.mrf.mxu0
    %v175 = vadd.f32 %v142, %v174
    %176 = vmatmul.f32.gmra.mxu0 %v155
    %v177 = vpop.f32.mrf.mxu0
    %v178 = vadd.f32 %v142, %v177
    %179 = vdwg.mxu0
    %180 = vmatpush.msra.mxu0 0.0
    %181 = vmatpush.msra.mxu0 0.0
    %182 = vmatpush.msra.mxu0 0.0
    %183 = vmatpush.msra.mxu0 0.0
    %184 = vmatpush.msra.mxu0 0.0
    %185 = vmatpush.msra.mxu0 0.0
    %186 = vmatpush.msra.mxu0 0.0
    %187 = vmatpush.msra.mxu0 0.0
    %188 = vmatpush.msra.mxu0 0.0
    %189 = vmatpush.msra.mxu0 0.0
    %190 = vmatpush.msra.mxu0 0.0
    %191 = vmatpush.msra.mxu0 0.0
    %192 = vmatpush.msra.mxu0 0.0
    %193 = vmatpush.msra.mxu0 0.0
    %194 = vmatpush.msra.mxu0 %v90
    %195 = vmatpush.msra.mxu0 %v87
    %196 = vmatmul.f32.gmra.mxu0 %v152
    %v197 = vpop.f32.mrf.mxu0
    %v198 = vadd.f32 %v143, %v197
    %199 = vmatmul.f32.gmra.mxu0 %v155
    %v200 = vpop.f32.mrf.mxu0
    %v201 = vadd.f32 %v143, %v200
    %202 = vdwg.mxu0
    %203 = vmatpush.msra.mxu0 0.0
    %204 = vmatpush.msra.mxu0 0.0
    %205 = vmatpush.msra.mxu0 0.0
    %206 = vmatpush.msra.mxu0 0.0
    %207 = vmatpush.msra.mxu0 0.0
    %208 = vmatpush.msra.mxu0 0.0
    %209 = vmatpush.msra.mxu0 0.0
    %210 = vmatpush.msra.mxu0 0.0
    %211 = vmatpush.msra.mxu0 0.0
    %212 = vmatpush.msra.mxu0 0.0
    %213 = vmatpush.msra.mxu0 0.0
    %214 = vmatpush.msra.mxu0 0.0
    %215 = vmatpush.msra.mxu0 0.0
    %216 = vmatpush.msra.mxu0 0.0
    %217 = vmatpush.msra.mxu0 %v113
    %218 = vmatpush.msra.mxu0 %v110
    %219 = vmatmul.f32.gmra.mxu0 %v152
    %v220 = vpop.f32.mrf.mxu0
    %v221 = vadd.f32 %v144, %v220
    %222 = vmatmul.f32.gmra.mxu0 %v155
    %v223 = vpop.f32.mrf.mxu0
    %v224 = vadd.f32 %v144, %v223
    %225 = vdwg.mxu0
    %226 = vmatpush.msra.mxu0 0.0
    %227 = vmatpush.msra.mxu0 0.0
    %228 = vmatpush.msra.mxu0 0.0
    %229 = vmatpush.msra.mxu0 0.0
    %230 = vmatpush.msra.mxu0 0.0
    %231 = vmatpush.msra.mxu0 0.0
    %232 = vmatpush.msra.mxu0 0.0
    %233 = vmatpush.msra.mxu0 0.0
    %234 = vmatpush.msra.mxu0 0.0
    %235 = vmatpush.msra.mxu0 0.0
    %236 = vmatpush.msra.mxu0 0.0
    %237 = vmatpush.msra.mxu0 0.0
    %238 = vmatpush.msra.mxu0 0.0
    %239 = vmatpush.msra.mxu0 0.0
    %240 = vmatpush.msra.mxu0 %v136
    %241 = vmatpush.msra.mxu0 %v133
    %242 = vmatmul.f32.gmra.mxu0 %v152
    %v243 = vpop.f32.mrf.mxu0
    %v244 = vadd.f32 %v145, %v243
    %245 = vmatmul.f32.gmra.mxu0 %v155
    %v246 = vpop.f32.mrf.mxu0
    %v247 = vadd.f32 %v145, %v246
    %248 = vdwg.mxu0
    %v249 = vxor.u32 %v175, 2147483648
    %v250 = vxor.u32 %v198, 2147483648
    %v251 = vxor.u32 %v178, 2147483648
    %v252 = vxor.u32 %v201, 2147483648
    %v253 = vmul.f32 %v249, 1.442695
    %v254 = vpow.pop %v253
    %v255 = vmul.f32 %v250, 1.442695
    %v256 = vpow.pop %v255
    %v257 = vmul.f32 %v251, 1.442695
    %v258 = vpow.pop %v257
    %v259 = vmul.f32 %v252, 1.442695
    %v260 = vpow.pop %v259
    %v261 = vadd.f32 %v254, 1.0
    %v262 = vadd.f32 %v256, 1.0
    %v263 = vadd.f32 %v258, 1.0
    %v264 = vadd.f32 %v260, 1.0
    %v265 = vrcp.pop %v261
    %v266 = vmul.f32 %v261, %v265
    %v267 = vsub.f32 1.0, %v266
    %v268 = vmul.f32 %v265, %v267
    %v269 = vadd.f32 %v265, %v268
    %vm270 = vweird.f32 %v261
    %vm271 = vweird.f32 %v265
    %vm272 = vmor %vm270, %vm271
    %v273 = vsel %vm272, %v265, %v269
    %v274 = vand.u32 2147483647, %v261
    %vm275 = vcmp.eq.f32.partialorder %v274, 8.507059e+37
    %v276 = vand.u32 %v261, 2147483648
    %v277 = vor.u32 1.1754944e-38, %v276
    %v278 = vsel %vm275, %v277, %v273
    %v279 = vmul.f32 1.0, %v278
    %v280 = vrcp.pop %v262
    %v281 = vmul.f32 %v262, %v280
    %v282 = vsub.f32 1.0, %v281
    %v283 = vmul.f32 %v280, %v282
    %v284 = vadd.f32 %v280, %v283
    %vm285 = vweird.f32 %v262
    %vm286 = vweird.f32 %v280
    %vm287 = vmor %vm285, %vm286
    %v288 = vsel %vm287, %v280, %v284
    %v289 = vand.u32 2147483647, %v262
    %vm290 = vcmp.eq.f32.partialorder %v289, 8.507059e+37
    %v291 = vand.u32 %v262, 2147483648
    %v292 = vor.u32 1.1754944e-38, %v291
    %v293 = vsel %vm290, %v292, %v288
    %v294 = vmul.f32 1.0, %v293
    %v295 = vrcp.pop %v263
    %v296 = vmul.f32 %v263, %v295
    %v297 = vsub.f32 1.0, %v296
    %v298 = vmul.f32 %v295, %v297
    %v299 = vadd.f32 %v295, %v298
    %vm300 = vweird.f32 %v263
    %vm301 = vweird.f32 %v295
    %vm302 = vmor %vm300, %vm301
    %v303 = vsel %vm302, %v295, %v299
    %v304 = vand.u32 2147483647, %v263
    %vm305 = vcmp.eq.f32.partialorder %v304, 8.507059e+37
    %v306 = vand.u32 %v263, 2147483648
    %v307 = vor.u32 1.1754944e-38, %v306
    %v308 = vsel %vm305, %v307, %v303
    %v309 = vmul.f32 1.0, %v308
    %v310 = vrcp.pop %v264
    %v311 = vmul.f32 %v264, %v310
    %v312 = vsub.f32 1.0, %v311
    %v313 = vmul.f32 %v310, %v312
    %v314 = vadd.f32 %v310, %v313
    %vm315 = vweird.f32 %v264
    %vm316 = vweird.f32 %v310
    %vm317 = vmor %vm315, %vm316
    %v318 = vsel %vm317, %v310, %v314
    %v319 = vand.u32 2147483647, %v264
    %vm320 = vcmp.eq.f32.partialorder %v319, 8.507059e+37
    %v321 = vand.u32 %v264, 2147483648
    %v322 = vor.u32 1.1754944e-38, %v321
    %v323 = vsel %vm320, %v322, %v318
    %v324 = vmul.f32 1.0, %v323
    %v325 = vtanh.pop %v221
    %v326 = vtanh.pop %v244
    %v327 = vtanh.pop %v224
    %v328 = vtanh.pop %v247
    %v329 = vsub.f32 1.0, %v279
    %v330 = vsub.f32 1.0, %v294
    %v331 = vsub.f32 1.0, %v309
    %v332 = vsub.f32 1.0, %v324
    %v333 = vmul.f32 %v329, %v325
    %v334 = vmul.f32 %v330, %v326
    %v335 = vmul.f32 %v331, %v327
    %v336 = vmul.f32 %v332, %v328
    %v337 = vld [vmem:[%s4] sm:$0xff]
    %v338 = vld [vmem:[%s4 + $0x8] sm:$0xff]
    %v339 = vld [vmem:[%s4 + $0x10] sm:$0xff]
    %v340 = vld [vmem:[%s4 + $0x18] sm:$0xff]
    %v341 = vld [vmem:[%s4 + $0x20] sm:$0xff]
    %v342 = vld [vmem:[%s4 + $0x28] sm:$0xff]
    %v343 = vld [vmem:[%s4 + $0x30] sm:$0xff]
    %v344 = vld [vmem:[%s4 + $0x38] sm:$0xff]
    %v345 = vld [vmem:[%s4 + $0x40] sm:$0xff]
    %v346 = vld [vmem:[%s4 + $0x48] sm:$0xff]
    %v347 = vld [vmem:[%s4 + $0x50] sm:$0xff]
    %v348 = vld [vmem:[%s4 + $0x58] sm:$0xff]
    %v349 = vld [vmem:[%s4 + $0x60] sm:$0xff]
    %v350 = vld [vmem:[%s4 + $0x68] sm:$0xff]
    %v351 = vld [vmem:[%s4 + $0x70] sm:$0xff]
    %v352 = vld [vmem:[%s4 + $0x78] sm:$0xff]
    %v353 = vld [vmem:[%s4 + $0x80] sm:$0xff]
    %v354 = vld [vmem:[%s4 + $0x88] sm:$0xff]
    %v355 = vld [vmem:[%s4 + $0x90] sm:$0xff]
    %v356 = vld [vmem:[%s4 + $0x98] sm:$0xff]
    %v357 = vld [vmem:[%s4 + $0xa0] sm:$0xff]
    %v358 = vld [vmem:[%s4 + $0xa8] sm:$0xff]
    %v359 = vld [vmem:[%s4 + $0xb0] sm:$0xff]
    %v360 = vld [vmem:[%s4 + $0xb8] sm:$0xff]
    %v361 = vld [vmem:[%s4 + $0xc0] sm:$0xff]
    %v362 = vld [vmem:[%s4 + $0xc8] sm:$0xff]
    %v363 = vld [vmem:[%s4 + $0xd0] sm:$0xff]
    %v364 = vld [vmem:[%s4 + $0xd8] sm:$0xff]
    %v365 = vld [vmem:[%s4 + $0xe0] sm:$0xff]
    %v366 = vld [vmem:[%s4 + $0xe8] sm:$0xff]
    %v367 = vld [vmem:[%s4 + $0xf0] sm:$0xff]
    %v368 = vld [vmem:[%s4 + $0xf8] sm:$0xff]
    %369 = vmatpush.msra.mxu0 %v352
    %370 = vmatpush.msra.mxu0 %v351
    %371 = vmatpush.msra.mxu0 %v350
    %372 = vmatpush.msra.mxu0 %v349
    %373 = vmatpush.msra.mxu0 %v348
    %374 = vmatpush.msra.mxu0 %v347
    %375 = vmatpush.msra.mxu0 %v346
    %376 = vmatpush.msra.mxu0 %v345
    %377 = vmatpush.msra.mxu0 %v344
    %378 = vmatpush.msra.mxu0 %v343
    %379 = vmatpush.msra.mxu0 %v342
    %380 = vmatpush.msra.mxu0 %v341
    %381 = vmatpush.msra.mxu0 %v340
    %382 = vmatpush.msra.mxu0 %v339
    %383 = vmatpush.msra.mxu0 %v338
    %384 = vmatpush.msra.mxu0 %v337
    %385 = vmatmul.f32.gmra.mxu0 %v333
    %v386 = vpop.f32.mrf.mxu0
    %v387 = vadd.f32 0.0, %v386
    %388 = vmatmul.f32.gmra.mxu0 %v335
    %v389 = vpop.f32.mrf.mxu0
    %v390 = vadd.f32 0.0, %v389
    %391 = vdwg.mxu0
    %392 = vmatpush.msra.mxu0 %v368
    %393 = vmatpush.msra.mxu0 %v367
    %394 = vmatpush.msra.mxu0 %v366
    %395 = vmatpush.msra.mxu0 %v365
    %396 = vmatpush.msra.mxu0 %v364
    %397 = vmatpush.msra.mxu0 %v363
    %398 = vmatpush.msra.mxu0 %v362
    %399 = vmatpush.msra.mxu0 %v361
    %400 = vmatpush.msra.mxu0 %v360
    %401 = vmatpush.msra.mxu0 %v359
    %402 = vmatpush.msra.mxu0 %v358
    %403 = vmatpush.msra.mxu0 %v357
    %404 = vmatpush.msra.mxu0 %v356
    %405 = vmatpush.msra.mxu0 %v355
    %406 = vmatpush.msra.mxu0 %v354
    %407 = vmatpush.msra.mxu0 %v353
    %408 = vmatmul.f32.gmra.mxu0 %v334
    %v409 = vpop.f32.mrf.mxu0
    %v410 = vadd.f32 %v387, %v409
    %411 = vmatmul.f32.gmra.mxu0 %v336
    %v412 = vpop.f32.mrf.mxu0
    %v413 = vadd.f32 %v390, %v412
    %414 = vdwg.mxu0
    %415 = vst.msk [vmem:[#allocation2] sm:$0xff] %vm39, %v410
    %416 = vst.msk [vmem:[#allocation2 + $0x8] sm:$0xff] %vm39, %v413
    // Predicated region
    $region22: #{encoder_a3tgcn_forward.1} parent=1 // pred_check
      _
    $region23: #{encoder_a3tgcn_forward.1} parent=1 // pred_check_branch
      %418 = sbr.rel (0) target = $region25
    $region24: #{encoder_a3tgcn_forward.1} parent=1 // pred_region
      %420 = vsyncadd [#allocation3], 0
      %s421 = sshll.u32 [#allocation2], 4
      %s422 = int_to_ptr.vmem [resolvable:$true] %s421
      %s423 = sshll.u32 %s5, 4
      %s424 = int_to_ptr.hbm [resolvable:$true] %s423
      %429 = dma.vmem_to_hbm [thread:$0]  %s422, 256, %s424, [#allocation3], 128, 128, 8
    $region25: #{encoder_a3tgcn_forward.1} parent=1 // pred_fallthru
      _
    // Predicated region
    $region26: #{encoder_a3tgcn_forward.1} parent=1 // pred_check
      _
    $region27: #{encoder_a3tgcn_forward.1} parent=1 // pred_check_branch
      %431 = sbr.rel (0) target = $region29
    $region28: #{encoder_a3tgcn_forward.1} parent=1 // pred_region
      %433 = dma.done [#allocation3], 256
    $region29: #{encoder_a3tgcn_forward.1} parent=1 // pred_fallthru
      _
    %434 = vsyncpa [#allocation3], 1

</llo_original>
